<compile_context>
chip_gen: v6e
topology: v6e:2x2x1
jax: 0.10.0
libtpu: 0.0.40
codegen_flags: <defaults>
</compile_context>

<pallas_src>
import jax
import jax.numpy as jnp
from jax.experimental import pallas as pl
from jax.experimental.pallas import tpu as pltpu

_NEG_SLOPE = 0.01  # torch.nn.LeakyReLU default negative_slope


def _head_math(x_ref, w1_ref, b1_ref, w2_ref, b2_ref):
    x = x_ref[...].astype(jnp.float32)
    # intermediate: Linear(768 -> interm) + LeakyReLU
    h = jnp.dot(x, w1_ref[...], preferred_element_type=jnp.float32) + b1_ref[...]
    h = jnp.where(h > 0, h, _NEG_SLOPE * h)
    # classifier: Linear(interm -> 2)
    y = jnp.dot(h, w2_ref[...], preferred_element_type=jnp.float32) + b2_ref[...]
    return h, y


def _encoder_head_kernel(x_ref, w1_ref, b1_ref, w2_ref, b2_ref,
                         enc_ref, out_ref):
    h, y = _head_math(x_ref, w1_ref, b1_ref, w2_ref, b2_ref)
    enc_ref[...] = h.astype(enc_ref.dtype)
    out_ref[...] = y.astype(out_ref.dtype)


def _logits_only_kernel(x_ref, w1_ref, b1_ref, w2_ref, b2_ref, out_ref):
    _, y = _head_math(x_ref, w1_ref, b1_ref, w2_ref, b2_ref)
    out_ref[...] = y.astype(out_ref.dtype)


def _pad2d(a, rows, cols, dtype):
    a = a.astype(dtype)
    r, c = a.shape
    if r == rows and c == cols:
        return a
    return jnp.pad(a, ((0, rows - r), (0, cols - c)))


def encoder_head(cls_emb, w1, b1, w2, b2, *, get_encoding=False,
                 block_rows=512):
    """Pallas TPU implementation of Encoder.forward downstream of the CLS token.

    cls_emb: (B, 768) CLS embeddings (what `transformer(**ids)[0][:, 0]` yields)
    w1, b1:  intermediate Linear params, shapes (768, interm), (interm,)
    w2, b2:  classifier Linear params,  shapes (interm, 2), (2,)
    Returns logits (B, 2), or (enc, logits) if get_encoding=True
    (matching `return (enc, output)` in the PyTorch module).
    """
    B, D = cls_emb.shape
    H = w1.shape[1]
    C = w2.shape[1]
    assert w1.shape == (D, H) and b1.shape == (H,)
    assert w2.shape == (H, C) and b2.shape == (C,)

    LANE = 128
    Dp = pl.cdiv(D, LANE) * LANE
    Hp = pl.cdiv(H, LANE) * LANE
    Cp = pl.cdiv(C, LANE) * LANE

    # Batch tile: multiple of 8 rows, capped at block_rows; pad batch to a
    # multiple of the tile (padded rows are sliced off afterwards).
    b8 = pl.cdiv(B, 8) * 8
    tm = min(block_rows, b8)
    Bp = pl.cdiv(b8, tm) * tm

    f32 = jnp.float32
    x_p = _pad2d(cls_emb, Bp, Dp, f32)
    w1_p = _pad2d(w1, Dp, Hp, f32)
    b1_p = _pad2d(b1.reshape(1, H), 1, Hp, f32)
    w2_p = _pad2d(w2, Hp, Cp, f32)
    b2_p = _pad2d(b2.reshape(1, C), 1, Cp, f32)

    grid = (Bp // tm,)
    flops = 2 * Bp * Dp * Hp + 2 * Bp * Hp * Cp
    bytes_accessed = 4 * (Bp * Dp + Dp * Hp + Hp + Hp * Cp + Cp + Bp * Cp
                          + (Bp * Hp if get_encoding else 0))

    in_specs = [
        pl.BlockSpec((tm, Dp), lambda i: (i, 0)),   # CLS embeddings (streamed)
        pl.BlockSpec((Dp, Hp), lambda i: (0, 0)),   # W1 (VMEM-resident)
        pl.BlockSpec((1, Hp), lambda i: (0, 0)),    # b1
        pl.BlockSpec((Hp, Cp), lambda i: (0, 0)),   # W2 (VMEM-resident)
        pl.BlockSpec((1, Cp), lambda i: (0, 0)),    # b2
    ]
    compiler_params = pltpu.CompilerParams(
        dimension_semantics=("parallel",),
        vmem_limit_bytes=32 * 1024 * 1024,
    )
    cost = pl.CostEstimate(flops=flops, transcendentals=0,
                           bytes_accessed=bytes_accessed)

    if get_encoding:
        enc_p, out_p = pl.pallas_call(
            _encoder_head_kernel,
            out_shape=(jax.ShapeDtypeStruct((Bp, Hp), cls_emb.dtype),
                       jax.ShapeDtypeStruct((Bp, Cp), cls_emb.dtype)),
            grid_spec=pltpu.PrefetchScalarGridSpec(
                num_scalar_prefetch=0,
                grid=grid,
                in_specs=in_specs,
                out_specs=[
                    pl.BlockSpec((tm, Hp), lambda i: (i, 0)),   # enc
                    pl.BlockSpec((tm, Cp), lambda i: (i, 0)),   # logits
                ],
            ),
            compiler_params=compiler_params,
            cost_estimate=cost,
        )(x_p, w1_p, b1_p, w2_p, b2_p)
        return enc_p[:B, :H], out_p[:B, :C]

    out_p = pl.pallas_call(
        _logits_only_kernel,
        out_shape=jax.ShapeDtypeStruct((Bp, Cp), cls_emb.dtype),
        grid_spec=pltpu.PrefetchScalarGridSpec(
            num_scalar_prefetch=0,
            grid=grid,
            in_specs=in_specs,
            out_specs=pl.BlockSpec((tm, Cp), lambda i: (i, 0)),  # logits
        ),
        compiler_params=compiler_params,
        cost_estimate=cost,
    )(x_p, w1_p, b1_p, w2_p, b2_p)
    return out_p[:B, :C]


if __name__ == "__main__":
    # Small, deterministic example consistent with the module:
    # batch=4 CLS embeddings of width 768, interm_size=64, 2 classes.
    key = jax.random.PRNGKey(0)
    k1, k2, k3, k4, k5 = jax.random.split(key, 5)
    B, D, H, C = 4, 768, 64, 2

    cls_emb = jax.random.normal(k1, (B, D), dtype=jnp.float32)
    w1 = jax.random.normal(k2, (D, H), dtype=jnp.float32) / jnp.sqrt(D)
    b1 = jax.random.normal(k3, (H,), dtype=jnp.float32) * 0.1
    w2 = jax.random.normal(k4, (H, C), dtype=jnp.float32) / jnp.sqrt(H)
    b2 = jax.random.normal(k5, (C,), dtype=jnp.float32) * 0.1

    # get_encoding=True path (returns (enc, logits), like the PyTorch module)
    enc, logits = encoder_head(cls_emb, w1, b1, w2, b2, get_encoding=True)
    logits = jax.block_until_ready(logits)
    enc = jax.block_until_ready(enc)

    # get_encoding=False path (logits only, no encoding writeback)
    logits_only = jax.block_until_ready(
        encoder_head(cls_emb, w1, b1, w2, b2, get_encoding=False))

    # Plain-JAX reference (mirrors intermediate -> classifier exactly).
    h_ref = cls_emb @ w1 + b1
    h_ref = jnp.where(h_ref > 0, h_ref, _NEG_SLOPE * h_ref)
    out_ref = h_ref @ w2 + b2

    assert enc.shape == (B, H) and logits.shape == (B, C)
    assert logits_only.shape == (B, C)
    assert jnp.allclose(enc, h_ref, rtol=1e-3, atol=1e-3)
    assert jnp.allclose(logits, out_ref, rtol=1e-3, atol=1e-3)
    assert jnp.allclose(logits_only, out_ref, rtol=1e-3, atol=1e-3)

    print("KERNEL_OK")
</pallas_src>

<mosaic_0001>
module attributes {stable_mosaic.version = 11 : i64} {
  func.func @_encoder_head_kernel(%arg0: i32, %arg1: memref<8x768xf32, #tpu.memory_space<vmem>>, %arg2: memref<768x128xf32, #tpu.memory_space<vmem>>, %arg3: memref<1x128xf32, #tpu.memory_space<vmem>>, %arg4: memref<128x128xf32, #tpu.memory_space<vmem>>, %arg5: memref<1x128xf32, #tpu.memory_space<vmem>>, %arg6: memref<8x128xf32, #tpu.memory_space<vmem>>, %arg7: memref<8x128xf32, #tpu.memory_space<vmem>>) attributes {dimension_semantics = [#tpu.dimension_semantics<parallel>], iteration_bounds = array<i64: 1>, scalar_prefetch = 0 : i64, scratch_operands = 0 : i64, tpu.core_type = #tpu.core_type<tc>, window_params = [{transform_indices = @transform_0, window_bounds = array<i64: 8, 768>}, {pipeline_mode = #tpu.pipeline_mode<synchronous>, transform_indices = @transform_1, window_bounds = array<i64: 768, 128>}, {pipeline_mode = #tpu.pipeline_mode<synchronous>, transform_indices = @transform_2, window_bounds = array<i64: 1, 128>}, {pipeline_mode = #tpu.pipeline_mode<synchronous>, transform_indices = @transform_3, window_bounds = array<i64: 128, 128>}, {pipeline_mode = #tpu.pipeline_mode<synchronous>, transform_indices = @transform_4, window_bounds = array<i64: 1, 128>}, {transform_indices = @transform_5, window_bounds = array<i64: 8, 128>}, {transform_indices = @transform_6, window_bounds = array<i64: 8, 128>}]} {
    %c0 = arith.constant 0 : index
    %c0_0 = arith.constant 0 : index
    %0 = vector.load %arg1[%c0, %c0_0] : memref<8x768xf32, #tpu.memory_space<vmem>>, vector<8x768xf32>
    %c0_1 = arith.constant 0 : index
    %c0_2 = arith.constant 0 : index
    %1 = vector.load %arg2[%c0_1, %c0_2] : memref<768x128xf32, #tpu.memory_space<vmem>>, vector<768x128xf32>
    %cst = arith.constant dense<0.000000e+00> : vector<8x128xf32>
    %2 = tpu.matmul %0, %1, %cst {dimension_numbers = #tpu.dot_dimension_numbers<[1], [0], [0], [1], [0, 0, 1, 1], [], []>} : vector<8x768xf32>, vector<768x128xf32>, vector<8x128xf32> -> vector<8x128xf32>
    %c0_3 = arith.constant 0 : index
    %c0_4 = arith.constant 0 : index
    %3 = vector.load %arg3[%c0_3, %c0_4] : memref<1x128xf32, #tpu.memory_space<vmem>>, vector<1x128xf32>
    %4 = vector.broadcast %3 : vector<1x128xf32> to vector<8x128xf32>
    %5 = arith.addf %2, %4 : vector<8x128xf32>
    %cst_5 = arith.constant 0.000000e+00 : f32
    %6 = vector.broadcast %cst_5 : f32 to vector<8x128xf32>
    %7 = arith.cmpf ogt, %5, %6 : vector<8x128xf32>
    %cst_6 = arith.constant 0.00999999977 : f32
    %8 = vector.broadcast %cst_6 : f32 to vector<8x128xf32>
    %9 = arith.mulf %8, %5 : vector<8x128xf32>
    %10 = arith.select %7, %5, %9 : vector<8x128xi1>, vector<8x128xf32>
    %c0_7 = arith.constant 0 : index
    %c0_8 = arith.constant 0 : index
    %11 = vector.load %arg4[%c0_7, %c0_8] : memref<128x128xf32, #tpu.memory_space<vmem>>, vector<128x128xf32>
    %cst_9 = arith.constant dense<0.000000e+00> : vector<8x128xf32>
    %12 = tpu.matmul %10, %11, %cst_9 {dimension_numbers = #tpu.dot_dimension_numbers<[1], [0], [0], [1], [0, 0, 1, 1], [], []>} : vector<8x128xf32>, vector<128x128xf32>, vector<8x128xf32> -> vector<8x128xf32>
    %c0_10 = arith.constant 0 : index
    %c0_11 = arith.constant 0 : index
    %13 = vector.load %arg5[%c0_10, %c0_11] : memref<1x128xf32, #tpu.memory_space<vmem>>, vector<1x128xf32>
    %14 = vector.broadcast %13 : vector<1x128xf32> to vector<8x128xf32>
    %15 = arith.addf %12, %14 : vector<8x128xf32>
    %c0_12 = arith.constant 0 : index
    %c0_13 = arith.constant 0 : index
    %16 = vector.load %arg6[%c0_12, %c0_13] : memref<8x128xf32, #tpu.memory_space<vmem>>, vector<8x128xf32>
    tpu.vector_store %arg6[%c0_12, %c0_13], %10 {strides = array<i32>} : memref<8x128xf32, #tpu.memory_space<vmem>>, vector<8x128xf32>,
    %c0_14 = arith.constant 0 : index
    %c0_15 = arith.constant 0 : index
    %17 = vector.load %arg7[%c0_14, %c0_15] : memref<8x128xf32, #tpu.memory_space<vmem>>, vector<8x128xf32>
    tpu.vector_store %arg7[%c0_14, %c0_15], %15 {strides = array<i32>} : memref<8x128xf32, #tpu.memory_space<vmem>>, vector<8x128xf32>,
    return
  }
  func.func @transform_0(%arg0: i32) -> (i32, i32) {
    %c0_i32 = arith.constant 0 : i32
    %c0_i32_0 = arith.constant 0 : i32
    return %arg0, %c0_i32 : i32, i32
  }
  func.func @transform_1(%arg0: i32) -> (i32, i32) {
    %c0_i32 = arith.constant 0 : i32
    %c0_i32_0 = arith.constant 0 : i32
    %c0_i32_1 = arith.constant 0 : i32
    return %c0_i32, %c0_i32_0 : i32, i32
  }
  func.func @transform_2(%arg0: i32) -> (i32, i32) {
    %c0_i32 = arith.constant 0 : i32
    %c0_i32_0 = arith.constant 0 : i32
    %c0_i32_1 = arith.constant 0 : i32
    return %c0_i32, %c0_i32_0 : i32, i32
  }
  func.func @transform_3(%arg0: i32) -> (i32, i32) {
    %c0_i32 = arith.constant 0 : i32
    %c0_i32_0 = arith.constant 0 : i32
    %c0_i32_1 = arith.constant 0 : i32
    return %c0_i32, %c0_i32_0 : i32, i32
  }
  func.func @transform_4(%arg0: i32) -> (i32, i32) {
    %c0_i32 = arith.constant 0 : i32
    %c0_i32_0 = arith.constant 0 : i32
    %c0_i32_1 = arith.constant 0 : i32
    return %c0_i32, %c0_i32_0 : i32, i32
  }
  func.func @transform_5(%arg0: i32) -> (i32, i32) {
    %c0_i32 = arith.constant 0 : i32
    %c0_i32_0 = arith.constant 0 : i32
    return %arg0, %c0_i32 : i32, i32
  }
  func.func @transform_6(%arg0: i32) -> (i32, i32) {
    %c0_i32 = arith.constant 0 : i32
    %c0_i32_0 = arith.constant 0 : i32
    return %arg0, %c0_i32 : i32, i32
  }
}

</mosaic_0001>

<llo_original>
// kernel: tpu_custom_call.1
$region0: #{tpu_custom_call.1}
  #allocation0 [shape = 'u32[]', space=smem, size = 0x4, offset = 0x4, fixed_abs, tag = 'smem constant byte address 0x4 - core index']
  #allocation1 [shape = 'u32[144,128]{1,0:T(1,128)}', space=vmem, size = 0x12000, scoped, tag = 'internal scratch']
  %s0 = inlined_call_operand.hbm [shape: f32[8,768], index: 0, kind: input, shape index: {}]
  %s1 = inlined_call_operand.hbm [shape: f32[768,128], index: 1, kind: input, shape index: {}]
  %s2 = inlined_call_operand.vmem [shape: f32[1,128], index: 2, kind: input, shape index: {}]
  %s3 = inlined_call_operand.hbm [shape: f32[128,128], index: 3, kind: input, shape index: {}]
  %s4 = inlined_call_operand.vmem [shape: f32[1,128], index: 4, kind: input, shape index: {}]
  %s5 = inlined_call_operand.hbm [shape: f32[8,128], index: 5, kind: output, shape index: {0}]
  %s6 = inlined_call_operand.hbm [shape: f32[8,128], index: 6, kind: output, shape index: {1}]
  %7 = xla_tuple %s5, %s6
  %s8 = sld [smem:[#allocation0]]
  $region50: #{tpu_custom_call.1} parent=0
    _
  %s10 = ssub.s32 1, %s8
  %s11 = scalar_select 0, %s10, %s8
  $region1: #{tpu_custom_call.1} parent=0
    #allocation2 [shape = 'u8[24576]{0}', space=vmem, size = 0x6000, scoped, tag = 'input window, operand 0, single buffered']
    #allocation3 [shape = 's32[1]{0}', space=sflag, size = 0x4, scoped, tag = 'scoped memory for tpu_custom_call.1']
    #allocation4 [shape = 's32[1]{0}', space=sflag, size = 0x4, scoped, tag = 'scoped memory for tpu_custom_call.1']
    #allocation5 [shape = 'u8[393216]{0}', space=vmem, size = 0x60000, scoped, tag = 'input window, operand 1, single buffered']
    #allocation6 [shape = 's32[1]{0}', space=sflag, size = 0x4, scoped, tag = 'scoped memory for tpu_custom_call.1']
    #allocation7 [shape = 'u8[65536]{0}', space=vmem, size = 0x10000, scoped, tag = 'input window, operand 3, single buffered']
    #allocation8 [shape = 'u8[4096]{0}', space=vmem, size = 0x1000, scoped, tag = 'output window, operand 0, single buffered']
    #allocation9 [shape = 'u8[4096]{0}', space=vmem, size = 0x1000, scoped, tag = 'output window, operand 1, single buffered']
    #allocation10 [shape = 's32[1]{0}', space=sflag, size = 0x4, scoped, tag = 'scoped memory for tpu_custom_call.1']
    %12 = vsyncpa [#allocation3], 0
    %13 = vsyncpa [#allocation6], 0
    %14 = vsyncpa [#allocation4], 0
    %15 = vsyncpa [#allocation10], 0
    // Predicated region
    $region2: #{tpu_custom_call.1} parent=1 // pred_check
      _
    $region3: #{tpu_custom_call.1} parent=1 // pred_check_branch
      %17 = sbr.rel (0) target = $region5
    $region4: #{tpu_custom_call.1} parent=1 // pred_region
      %s19 = ssub.s32 768, 768
      %20 = vsyncadd [#allocation3], %s19
      %s22 = sshll.u32 [#allocation2], 4
      %s23 = int_to_ptr.vmem [resolvable:$true] %s22
      %25 = dma.hbm_to_vmem [thread:$0]  %s0, 768, %s23, [#allocation3]
    $region5: #{tpu_custom_call.1} parent=1 // pred_fallthru
      _
    // Predicated region
    $region6: #{tpu_custom_call.1} parent=1 // pred_check
      _
    $region7: #{tpu_custom_call.1} parent=1 // pred_check_branch
      %27 = sbr.rel (0) target = $region9
    $region8: #{tpu_custom_call.1} parent=1 // pred_region
      %s29 = ssub.s32 12288, 12288
      %30 = vsyncadd [#allocation6], %s29
      %s31 = sshll.u32 [#allocation5], 4
      %s32 = int_to_ptr.vmem [resolvable:$true] %s31
      %37 = dma.hbm_to_vmem [thread:$0]  %s1, 12288, %s32, [#allocation6], 128, 128, 8
    $region9: #{tpu_custom_call.1} parent=1 // pred_fallthru
      _
    // Predicated region
    $region10: #{tpu_custom_call.1} parent=1 // pred_check
      _
    $region11: #{tpu_custom_call.1} parent=1 // pred_check_branch
      %39 = sbr.rel (0) target = $region13
    $region12: #{tpu_custom_call.1} parent=1 // pred_region
      _
    $region13: #{tpu_custom_call.1} parent=1 // pred_fallthru
      _
    // Predicated region
    $region14: #{tpu_custom_call.1} parent=1 // pred_check
      _
    $region15: #{tpu_custom_call.1} parent=1 // pred_check_branch
      %41 = sbr.rel (0) target = $region17
    $region16: #{tpu_custom_call.1} parent=1 // pred_region
      %s43 = ssub.s32 2048, 2048
      %44 = vsyncadd [#allocation6], %s43
      %s45 = sshll.u32 [#allocation7], 4
      %s46 = int_to_ptr.vmem [resolvable:$true] %s45
      %51 = dma.hbm_to_vmem [thread:$0]  %s3, 2048, %s46, [#allocation6], 128, 128, 8
    $region17: #{tpu_custom_call.1} parent=1 // pred_fallthru
      _
    // Predicated region
    $region18: #{tpu_custom_call.1} parent=1 // pred_check
      _
    $region19: #{tpu_custom_call.1} parent=1 // pred_check_branch
      %53 = sbr.rel (0) target = $region21
    $region20: #{tpu_custom_call.1} parent=1 // pred_region
      _
    $region21: #{tpu_custom_call.1} parent=1 // pred_fallthru
      _
    // Predicated region
    $region22: #{tpu_custom_call.1} parent=1 // pred_check
      _
    $region23: #{tpu_custom_call.1} parent=1 // pred_check_branch
      %55 = sbr.rel (0) target = $region25
    $region24: #{tpu_custom_call.1} parent=1 // pred_region
      %56 = dma.done [#allocation3], 768
    $region25: #{tpu_custom_call.1} parent=1 // pred_fallthru
      _
    // Predicated region
    $region26: #{tpu_custom_call.1} parent=1 // pred_check
      _
    $region27: #{tpu_custom_call.1} parent=1 // pred_check_branch
      %58 = sbr.rel (0) target = $region29
    $region28: #{tpu_custom_call.1} parent=1 // pred_region
      %59 = dma.done [#allocation6], 12288
    $region29: #{tpu_custom_call.1} parent=1 // pred_fallthru
      _
    // Predicated region
    $region30: #{tpu_custom_call.1} parent=1 // pred_check
      _
    $region31: #{tpu_custom_call.1} parent=1 // pred_check_branch
      %61 = sbr.rel (0) target = $region33
    $region32: #{tpu_custom_call.1} parent=1 // pred_region
      %62 = dma.done [#allocation6], 2048
    $region33: #{tpu_custom_call.1} parent=1 // pred_fallthru
      _
    %v63 = vld [vmem:[#allocation2] sm:$0xff]
    %v64 = vld [vmem:[#allocation2 + $0x8] sm:$0xff]
    %v65 = vld [vmem:[#allocation2 + $0x10] sm:$0xff]
    %v66 = vld [vmem:[#allocation2 + $0x18] sm:$0xff]
    %v67 = vld [vmem:[#allocation2 + $0x20] sm:$0xff]
    %v68 = vld [vmem:[#allocation2 + $0x28] sm:$0xff]
    %v69 = vld [vmem:[#allocation5] sm:$0xff]
    %v70 = vld [vmem:[#allocation5 + $0x8] sm:$0xff]
    %v71 = vld [vmem:[#allocation5 + $0x10] sm:$0xff]
    %v72 = vld [vmem:[#allocation5 + $0x18] sm:$0xff]
    %v73 = vld [vmem:[#allocation5 + $0x20] sm:$0xff]
    %v74 = vld [vmem:[#allocation5 + $0x28] sm:$0xff]
    %v75 = vld [vmem:[#allocation5 + $0x30] sm:$0xff]
    %v76 = vld [vmem:[#allocation5 + $0x38] sm:$0xff]
    %v77 = vld [vmem:[#allocation5 + $0x40] sm:$0xff]
    %v78 = vld [vmem:[#allocation5 + $0x48] sm:$0xff]
    %v79 = vld [vmem:[#allocation5 + $0x50] sm:$0xff]
    %v80 = vld [vmem:[#allocation5 + $0x58] sm:$0xff]
    %v81 = vld [vmem:[#allocation5 + $0x60] sm:$0xff]
    %v82 = vld [vmem:[#allocation5 + $0x68] sm:$0xff]
    %v83 = vld [vmem:[#allocation5 + $0x70] sm:$0xff]
    %v84 = vld [vmem:[#allocation5 + $0x78] sm:$0xff]
    %v85 = vld [vmem:[#allocation5 + $0x80] sm:$0xff]
    %v86 = vld [vmem:[#allocation5 + $0x88] sm:$0xff]
    %v87 = vld [vmem:[#allocation5 + $0x90] sm:$0xff]
    %v88 = vld [vmem:[#allocation5 + $0x98] sm:$0xff]
    %v89 = vld [vmem:[#allocation5 + $0xa0] sm:$0xff]
    %v90 = vld [vmem:[#allocation5 + $0xa8] sm:$0xff]
    %v91 = vld [vmem:[#allocation5 + $0xb0] sm:$0xff]
    %v92 = vld [vmem:[#allocation5 + $0xb8] sm:$0xff]
    %v93 = vld [vmem:[#allocation5 + $0xc0] sm:$0xff]
    %v94 = vld [vmem:[#allocation5 + $0xc8] sm:$0xff]
    %v95 = vld [vmem:[#allocation5 + $0xd0] sm:$0xff]
    %v96 = vld [vmem:[#allocation5 + $0xd8] sm:$0xff]
    %v97 = vld [vmem:[#allocation5 + $0xe0] sm:$0xff]
    %v98 = vld [vmem:[#allocation5 + $0xe8] sm:$0xff]
    %v99 = vld [vmem:[#allocation5 + $0xf0] sm:$0xff]
    %v100 = vld [vmem:[#allocation5 + $0xf8] sm:$0xff]
    %v101 = vld [vmem:[#allocation5 + $0x100] sm:$0xff]
    %v102 = vld [vmem:[#allocation5 + $0x108] sm:$0xff]
    %v103 = vld [vmem:[#allocation5 + $0x110] sm:$0xff]
    %v104 = vld [vmem:[#allocation5 + $0x118] sm:$0xff]
    %v105 = vld [vmem:[#allocation5 + $0x120] sm:$0xff]
    %v106 = vld [vmem:[#allocation5 + $0x128] sm:$0xff]
    %v107 = vld [vmem:[#allocation5 + $0x130] sm:$0xff]
    %v108 = vld [vmem:[#allocation5 + $0x138] sm:$0xff]
    %v109 = vld [vmem:[#allocation5 + $0x140] sm:$0xff]
    %v110 = vld [vmem:[#allocation5 + $0x148] sm:$0xff]
    %v111 = vld [vmem:[#allocation5 + $0x150] sm:$0xff]
    %v112 = vld [vmem:[#allocation5 + $0x158] sm:$0xff]
    %v113 = vld [vmem:[#allocation5 + $0x160] sm:$0xff]
    %v114 = vld [vmem:[#allocation5 + $0x168] sm:$0xff]
    %v115 = vld [vmem:[#allocation5 + $0x170] sm:$0xff]
    %v116 = vld [vmem:[#allocation5 + $0x178] sm:$0xff]
    %v117 = vld [vmem:[#allocation5 + $0x180] sm:$0xff]
    %v118 = vld [vmem:[#allocation5 + $0x188] sm:$0xff]
    %v119 = vld [vmem:[#allocation5 + $0x190] sm:$0xff]
    %v120 = vld [vmem:[#allocation5 + $0x198] sm:$0xff]
    %v121 = vld [vmem:[#allocation5 + $0x1a0] sm:$0xff]
    %v122 = vld [vmem:[#allocation5 + $0x1a8] sm:$0xff]
    %v123 = vld [vmem:[#allocation5 + $0x1b0] sm:$0xff]
    %v124 = vld [vmem:[#allocation5 + $0x1b8] sm:$0xff]
    %v125 = vld [vmem:[#allocation5 + $0x1c0] sm:$0xff]
    %v126 = vld [vmem:[#allocation5 + $0x1c8] sm:$0xff]
    %v127 = vld [vmem:[#allocation5 + $0x1d0] sm:$0xff]
    %v128 = vld [vmem:[#allocation5 + $0x1d8] sm:$0xff]
    %v129 = vld [vmem:[#allocation5 + $0x1e0] sm:$0xff]
    %v130 = vld [vmem:[#allocation5 + $0x1e8] sm:$0xff]
    %v131 = vld [vmem:[#allocation5 + $0x1f0] sm:$0xff]
    %v132 = vld [vmem:[#allocation5 + $0x1f8] sm:$0xff]
    %v133 = vld [vmem:[#allocation5 + $0x200] sm:$0xff]
    %v134 = vld [vmem:[#allocation5 + $0x208] sm:$0xff]
    %v135 = vld [vmem:[#allocation5 + $0x210] sm:$0xff]
    %v136 = vld [vmem:[#allocation5 + $0x218] sm:$0xff]
    %v137 = vld [vmem:[#allocation5 + $0x220] sm:$0xff]
    %v138 = vld [vmem:[#allocation5 + $0x228] sm:$0xff]
    %v139 = vld [vmem:[#allocation5 + $0x230] sm:$0xff]
    %v140 = vld [vmem:[#allocation5 + $0x238] sm:$0xff]
    %v141 = vld [vmem:[#allocation5 + $0x240] sm:$0xff]
    %v142 = vld [vmem:[#allocation5 + $0x248] sm:$0xff]
    %v143 = vld [vmem:[#allocation5 + $0x250] sm:$0xff]
    %v144 = vld [vmem:[#allocation5 + $0x258] sm:$0xff]
    %v145 = vld [vmem:[#allocation5 + $0x260] sm:$0xff]
    %v146 = vld [vmem:[#allocation5 + $0x268] sm:$0xff]
    %v147 = vld [vmem:[#allocation5 + $0x270] sm:$0xff]
    %v148 = vld [vmem:[#allocation5 + $0x278] sm:$0xff]
    %v149 = vld [vmem:[#allocation5 + $0x280] sm:$0xff]
    %v150 = vld [vmem:[#allocation5 + $0x288] sm:$0xff]
    %v151 = vld [vmem:[#allocation5 + $0x290] sm:$0xff]
    %v152 = vld [vmem:[#allocation5 + $0x298] sm:$0xff]
    %v153 = vld [vmem:[#allocation5 + $0x2a0] sm:$0xff]
    %v154 = vld [vmem:[#allocation5 + $0x2a8] sm:$0xff]
    %v155 = vld [vmem:[#allocation5 + $0x2b0] sm:$0xff]
    %v156 = vld [vmem:[#allocation5 + $0x2b8] sm:$0xff]
    %v157 = vld [vmem:[#allocation5 + $0x2c0] sm:$0xff]
    %v158 = vld [vmem:[#allocation5 + $0x2c8] sm:$0xff]
    %v159 = vld [vmem:[#allocation5 + $0x2d0] sm:$0xff]
    %v160 = vld [vmem:[#allocation5 + $0x2d8] sm:$0xff]
    %v161 = vld [vmem:[#allocation5 + $0x2e0] sm:$0xff]
    %v162 = vld [vmem:[#allocation5 + $0x2e8] sm:$0xff]
    %v163 = vld [vmem:[#allocation5 + $0x2f0] sm:$0xff]
    %v164 = vld [vmem:[#allocation5 + $0x2f8] sm:$0xff]
    %v165 = vld [vmem:[%s2] sm:$0x1]
    %v167 = vlaneseq
    %v168 = vshrl.u32 %v167, 7
    %v169 = vsub.s32 0, %v168
    %v170 = vrot.slane %v165, %v169
    %172 = vmatprep.subr.mxu0 0.0
    %173 = vmatpush1.msra.mxu0 %v84
    %174 = vmatprep.subr.mxu0 0.0
    %175 = vmatpush1.msra.mxu0 %v83
    %176 = vmatprep.subr.mxu0 0.0
    %177 = vmatpush1.msra.mxu0 %v82
    %178 = vmatprep.subr.mxu0 0.0
    %179 = vmatpush1.msra.mxu0 %v81
    %180 = vmatprep.subr.mxu0 0.0
    %181 = vmatpush1.msra.mxu0 %v80
    %182 = vmatprep.subr.mxu0 0.0
    %183 = vmatpush1.msra.mxu0 %v79
    %184 = vmatprep.subr.mxu0 0.0
    %185 = vmatpush1.msra.mxu0 %v78
    %186 = vmatprep.subr.mxu0 0.0
    %187 = vmatpush1.msra.mxu0 %v77
    %188 = vmatprep.subr.mxu0 0.0
    %189 = vmatpush1.msra.mxu0 %v76
    %190 = vmatprep.subr.mxu0 0.0
    %191 = vmatpush1.msra.mxu0 %v75
    %192 = vmatprep.subr.mxu0 0.0
    %193 = vmatpush1.msra.mxu0 %v74
    %194 = vmatprep.subr.mxu0 0.0
    %195 = vmatpush1.msra.mxu0 %v73
    %196 = vmatprep.subr.mxu0 0.0
    %197 = vmatpush1.msra.mxu0 %v72
    %198 = vmatprep.subr.mxu0 0.0
    %199 = vmatpush1.msra.mxu0 %v71
    %200 = vmatprep.subr.mxu0 0.0
    %201 = vmatpush1.msra.mxu0 %v70
    %202 = vmatprep.subr.mxu0 0.0
    %203 = vmatpush1.msra.mxu0 %v69
    %204 = vmatprep.subr.mxu0 0.0
    %205 = vmatpush2.msra.mxu0 %v100
    %206 = vmatprep.subr.mxu0 0.0
    %207 = vmatpush2.msra.mxu0 %v99
    %208 = vmatprep.subr.mxu0 0.0
    %209 = vmatpush2.msra.mxu0 %v98
    %210 = vmatprep.subr.mxu0 0.0
    %211 = vmatpush2.msra.mxu0 %v97
    %212 = vmatprep.subr.mxu0 0.0
    %213 = vmatpush2.msra.mxu0 %v96
    %214 = vmatprep.subr.mxu0 0.0
    %215 = vmatpush2.msra.mxu0 %v95
    %216 = vmatprep.subr.mxu0 0.0
    %217 = vmatpush2.msra.mxu0 %v94
    %218 = vmatprep.subr.mxu0 0.0
    %219 = vmatpush2.msra.mxu0 %v93
    %220 = vmatprep.subr.mxu0 0.0
    %221 = vmatpush2.msra.mxu0 %v92
    %222 = vmatprep.subr.mxu0 0.0
    %223 = vmatpush2.msra.mxu0 %v91
    %224 = vmatprep.subr.mxu0 0.0
    %225 = vmatpush2.msra.mxu0 %v90
    %226 = vmatprep.subr.mxu0 0.0
    %227 = vmatpush2.msra.mxu0 %v89
    %228 = vmatprep.subr.mxu0 0.0
    %229 = vmatpush2.msra.mxu0 %v88
    %230 = vmatprep.subr.mxu0 0.0
    %231 = vmatpush2.msra.mxu0 %v87
    %232 = vmatprep.subr.mxu0 0.0
    %233 = vmatpush2.msra.mxu0 %v86
    %234 = vmatprep.subr.mxu0 0.0
    %235 = vmatpush2.msra.mxu0 %v85
    %236 = vmatprep.mubr.f32.mxu0 %v64
    %237 = vmatmul.mubr.f32.gmra.mxu0 %v63
    %v238 = vpop.f32.mrf.mxu0
    %v239 = vadd.f32 %v170, %v238
    %v240 = vpop.f32.mrf.mxu0
    %241 = vdwg.mxu0
    %242 = vmatprep.subr.mxu0 0.0
    %243 = vmatpush1.msra.mxu0 %v116
    %244 = vmatprep.subr.mxu0 0.0
    %245 = vmatpush1.msra.mxu0 %v115
    %246 = vmatprep.subr.mxu0 0.0
    %247 = vmatpush1.msra.mxu0 %v114
    %248 = vmatprep.subr.mxu0 0.0
    %249 = vmatpush1.msra.mxu0 %v113
    %250 = vmatprep.subr.mxu0 0.0
    %251 = vmatpush1.msra.mxu0 %v112
    %252 = vmatprep.subr.mxu0 0.0
    %253 = vmatpush1.msra.mxu0 %v111
    %254 = vmatprep.subr.mxu0 0.0
    %255 = vmatpush1.msra.mxu0 %v110
    %256 = vmatprep.subr.mxu0 0.0
    %257 = vmatpush1.msra.mxu0 %v109
    %258 = vmatprep.subr.mxu0 0.0
    %259 = vmatpush1.msra.mxu0 %v108
    %260 = vmatprep.subr.mxu0 0.0
    %261 = vmatpush1.msra.mxu0 %v107
    %262 = vmatprep.subr.mxu0 0.0
    %263 = vmatpush1.msra.mxu0 %v106
    %264 = vmatprep.subr.mxu0 0.0
    %265 = vmatpush1.msra.mxu0 %v105
    %266 = vmatprep.subr.mxu0 0.0
    %267 = vmatpush1.msra.mxu0 %v104
    %268 = vmatprep.subr.mxu0 0.0
    %269 = vmatpush1.msra.mxu0 %v103
    %270 = vmatprep.subr.mxu0 0.0
    %271 = vmatpush1.msra.mxu0 %v102
    %272 = vmatprep.subr.mxu0 0.0
    %273 = vmatpush1.msra.mxu0 %v101
    %274 = vmatprep.subr.mxu0 0.0
    %275 = vmatpush2.msra.mxu0 %v132
    %276 = vmatprep.subr.mxu0 0.0
    %277 = vmatpush2.msra.mxu0 %v131
    %278 = vmatprep.subr.mxu0 0.0
    %279 = vmatpush2.msra.mxu0 %v130
    %280 = vmatprep.subr.mxu0 0.0
    %281 = vmatpush2.msra.mxu0 %v129
    %282 = vmatprep.subr.mxu0 0.0
    %283 = vmatpush2.msra.mxu0 %v128
    %284 = vmatprep.subr.mxu0 0.0
    %285 = vmatpush2.msra.mxu0 %v127
    %286 = vmatprep.subr.mxu0 0.0
    %287 = vmatpush2.msra.mxu0 %v126
    %288 = vmatprep.subr.mxu0 0.0
    %289 = vmatpush2.msra.mxu0 %v125
    %290 = vmatprep.subr.mxu0 0.0
    %291 = vmatpush2.msra.mxu0 %v124
    %292 = vmatprep.subr.mxu0 0.0
    %293 = vmatpush2.msra.mxu0 %v123
    %294 = vmatprep.subr.mxu0 0.0
    %295 = vmatpush2.msra.mxu0 %v122
    %296 = vmatprep.subr.mxu0 0.0
    %297 = vmatpush2.msra.mxu0 %v121
    %298 = vmatprep.subr.mxu0 0.0
    %299 = vmatpush2.msra.mxu0 %v120
    %300 = vmatprep.subr.mxu0 0.0
    %301 = vmatpush2.msra.mxu0 %v119
    %302 = vmatprep.subr.mxu0 0.0
    %303 = vmatpush2.msra.mxu0 %v118
    %304 = vmatprep.subr.mxu0 0.0
    %305 = vmatpush2.msra.mxu0 %v117
    %306 = vmatprep.mubr.f32.mxu0 %v66
    %307 = vmatmul.mubr.f32.gmra.mxu0 %v65
    %v308 = vpop.f32.mrf.mxu0
    %v309 = vadd.f32 %v239, %v308
    %v310 = vpop.f32.mrf.mxu0
    %311 = vdwg.mxu0
    %312 = vmatprep.subr.mxu0 0.0
    %313 = vmatpush1.msra.mxu0 %v148
    %314 = vmatprep.subr.mxu0 0.0
    %315 = vmatpush1.msra.mxu0 %v147
    %316 = vmatprep.subr.mxu0 0.0
    %317 = vmatpush1.msra.mxu0 %v146
    %318 = vmatprep.subr.mxu0 0.0
    %319 = vmatpush1.msra.mxu0 %v145
    %320 = vmatprep.subr.mxu0 0.0
    %321 = vmatpush1.msra.mxu0 %v144
    %322 = vmatprep.subr.mxu0 0.0
    %323 = vmatpush1.msra.mxu0 %v143
    %324 = vmatprep.subr.mxu0 0.0
    %325 = vmatpush1.msra.mxu0 %v142
    %326 = vmatprep.subr.mxu0 0.0
    %327 = vmatpush1.msra.mxu0 %v141
    %328 = vmatprep.subr.mxu0 0.0
    %329 = vmatpush1.msra.mxu0 %v140
    %330 = vmatprep.subr.mxu0 0.0
    %331 = vmatpush1.msra.mxu0 %v139
    %332 = vmatprep.subr.mxu0 0.0
    %333 = vmatpush1.msra.mxu0 %v138
    %334 = vmatprep.subr.mxu0 0.0
    %335 = vmatpush1.msra.mxu0 %v137
    %336 = vmatprep.subr.mxu0 0.0
    %337 = vmatpush1.msra.mxu0 %v136
    %338 = vmatprep.subr.mxu0 0.0
    %339 = vmatpush1.msra.mxu0 %v135
    %340 = vmatprep.subr.mxu0 0.0
    %341 = vmatpush1.msra.mxu0 %v134
    %342 = vmatprep.subr.mxu0 0.0
    %343 = vmatpush1.msra.mxu0 %v133
    %344 = vmatprep.subr.mxu0 0.0
    %345 = vmatpush2.msra.mxu0 %v164
    %346 = vmatprep.subr.mxu0 0.0
    %347 = vmatpush2.msra.mxu0 %v163
    %348 = vmatprep.subr.mxu0 0.0
    %349 = vmatpush2.msra.mxu0 %v162
    %350 = vmatprep.subr.mxu0 0.0
    %351 = vmatpush2.msra.mxu0 %v161
    %352 = vmatprep.subr.mxu0 0.0
    %353 = vmatpush2.msra.mxu0 %v160
    %354 = vmatprep.subr.mxu0 0.0
    %355 = vmatpush2.msra.mxu0 %v159
    %356 = vmatprep.subr.mxu0 0.0
    %357 = vmatpush2.msra.mxu0 %v158
    %358 = vmatprep.subr.mxu0 0.0
    %359 = vmatpush2.msra.mxu0 %v157
    %360 = vmatprep.subr.mxu0 0.0
    %361 = vmatpush2.msra.mxu0 %v156
    %362 = vmatprep.subr.mxu0 0.0
    %363 = vmatpush2.msra.mxu0 %v155
    %364 = vmatprep.subr.mxu0 0.0
    %365 = vmatpush2.msra.mxu0 %v154
    %366 = vmatprep.subr.mxu0 0.0
    %367 = vmatpush2.msra.mxu0 %v153
    %368 = vmatprep.subr.mxu0 0.0
    %369 = vmatpush2.msra.mxu0 %v152
    %370 = vmatprep.subr.mxu0 0.0
    %371 = vmatpush2.msra.mxu0 %v151
    %372 = vmatprep.subr.mxu0 0.0
    %373 = vmatpush2.msra.mxu0 %v150
    %374 = vmatprep.subr.mxu0 0.0
    %375 = vmatpush2.msra.mxu0 %v149
    %376 = vmatprep.mubr.f32.mxu0 %v68
    %377 = vmatmul.mubr.f32.gmra.mxu0 %v67
    %v378 = vpop.f32.mrf.mxu0
    %v379 = vadd.f32 %v309, %v378
    %v380 = vpop.f32.mrf.mxu0
    %381 = vdwg.mxu0
    %vm382 = vcmp.gt.f32.partialorder %v379, 0.0
    %v383 = vmul.f32 %v379, 0.01
    %v384 = vsel %vm382, %v379, %v383
    %v385 = vld [vmem:[#allocation7] sm:$0xff]
    %v386 = vld [vmem:[#allocation7 + $0x8] sm:$0xff]
    %v387 = vld [vmem:[#allocation7 + $0x10] sm:$0xff]
    %v388 = vld [vmem:[#allocation7 + $0x18] sm:$0xff]
    %v389 = vld [vmem:[#allocation7 + $0x20] sm:$0xff]
    %v390 = vld [vmem:[#allocation7 + $0x28] sm:$0xff]
    %v391 = vld [vmem:[#allocation7 + $0x30] sm:$0xff]
    %v392 = vld [vmem:[#allocation7 + $0x38] sm:$0xff]
    %v393 = vld [vmem:[#allocation7 + $0x40] sm:$0xff]
    %v394 = vld [vmem:[#allocation7 + $0x48] sm:$0xff]
    %v395 = vld [vmem:[#allocation7 + $0x50] sm:$0xff]
    %v396 = vld [vmem:[#allocation7 + $0x58] sm:$0xff]
    %v397 = vld [vmem:[#allocation7 + $0x60] sm:$0xff]
    %v398 = vld [vmem:[#allocation7 + $0x68] sm:$0xff]
    %v399 = vld [vmem:[#allocation7 + $0x70] sm:$0xff]
    %v400 = vld [vmem:[#allocation7 + $0x78] sm:$0xff]
    %v401 = vld [vmem:[%s4] sm:$0x1]
    %v403 = vlaneseq
    %v404 = vshrl.u32 %v403, 7
    %v405 = vsub.s32 0, %v404
    %v406 = vrot.slane %v401, %v405
    %408 = vmatprep.subr.mxu0 0.0
    %409 = vmatpush1.msra.mxu0 %v400
    %410 = vmatprep.subr.mxu0 0.0
    %411 = vmatpush1.msra.mxu0 %v399
    %412 = vmatprep.subr.mxu0 0.0
    %413 = vmatpush1.msra.mxu0 %v398
    %414 = vmatprep.subr.mxu0 0.0
    %415 = vmatpush1.msra.mxu0 %v397
    %416 = vmatprep.subr.mxu0 0.0
    %417 = vmatpush1.msra.mxu0 %v396
    %418 = vmatprep.subr.mxu0 0.0
    %419 = vmatpush1.msra.mxu0 %v395
    %420 = vmatprep.subr.mxu0 0.0
    %421 = vmatpush1.msra.mxu0 %v394
    %422 = vmatprep.subr.mxu0 0.0
    %423 = vmatpush1.msra.mxu0 %v393
    %424 = vmatprep.subr.mxu0 0.0
    %425 = vmatpush1.msra.mxu0 %v392
    %426 = vmatprep.subr.mxu0 0.0
    %427 = vmatpush1.msra.mxu0 %v391
    %428 = vmatprep.subr.mxu0 0.0
    %429 = vmatpush1.msra.mxu0 %v390
    %430 = vmatprep.subr.mxu0 0.0
    %431 = vmatpush1.msra.mxu0 %v389
    %432 = vmatprep.subr.mxu0 0.0
    %433 = vmatpush1.msra.mxu0 %v388
    %434 = vmatprep.subr.mxu0 0.0
    %435 = vmatpush1.msra.mxu0 %v387
    %436 = vmatprep.subr.mxu0 0.0
    %437 = vmatpush1.msra.mxu0 %v386
    %438 = vmatprep.subr.mxu0 0.0
    %439 = vmatpush1.msra.mxu0 %v385
    %440 = vmatprep.subr.mxu0 0.0
    %441 = vmatpush2.msra.mxu0 0.0
    %442 = vmatprep.subr.mxu0 0.0
    %443 = vmatpush2.msra.mxu0 0.0
    %444 = vmatprep.subr.mxu0 0.0
    %445 = vmatpush2.msra.mxu0 0.0
    %446 = vmatprep.subr.mxu0 0.0
    %447 = vmatpush2.msra.mxu0 0.0
    %448 = vmatprep.subr.mxu0 0.0
    %449 = vmatpush2.msra.mxu0 0.0
    %450 = vmatprep.subr.mxu0 0.0
    %451 = vmatpush2.msra.mxu0 0.0
    %452 = vmatprep.subr.mxu0 0.0
    %453 = vmatpush2.msra.mxu0 0.0
    %454 = vmatprep.subr.mxu0 0.0
    %455 = vmatpush2.msra.mxu0 0.0
    %456 = vmatprep.subr.mxu0 0.0
    %457 = vmatpush2.msra.mxu0 0.0
    %458 = vmatprep.subr.mxu0 0.0
    %459 = vmatpush2.msra.mxu0 0.0
    %460 = vmatprep.subr.mxu0 0.0
    %461 = vmatpush2.msra.mxu0 0.0
    %462 = vmatprep.subr.mxu0 0.0
    %463 = vmatpush2.msra.mxu0 0.0
    %464 = vmatprep.subr.mxu0 0.0
    %465 = vmatpush2.msra.mxu0 0.0
    %466 = vmatprep.subr.mxu0 0.0
    %467 = vmatpush2.msra.mxu0 0.0
    %468 = vmatprep.subr.mxu0 0.0
    %469 = vmatpush2.msra.mxu0 0.0
    %470 = vmatprep.subr.mxu0 0.0
    %471 = vmatpush2.msra.mxu0 0.0
    %472 = vmatprep.mubr.f32.mxu0 0.0
    %473 = vmatmul.mubr.f32.gmra.mxu0 %v384
    %v474 = vpop.f32.mrf.mxu0
    %v475 = vadd.f32 %v406, %v474
    %v476 = vpop.f32.mrf.mxu0
    %477 = vdwg.mxu0
    %478 = vst [vmem:[#allocation8] sm:$0xff] %v384
    %479 = vst [vmem:[#allocation9] sm:$0xff] %v475
    // Predicated region
    $region34: #{tpu_custom_call.1} parent=1 // pred_check
      _
    $region35: #{tpu_custom_call.1} parent=1 // pred_check_branch
      %481 = sbr.rel (0) target = $region37
    $region36: #{tpu_custom_call.1} parent=1 // pred_region
      %s483 = ssub.s32 128, 128
      %484 = vsyncadd [#allocation4], %s483
      %s486 = sshll.u32 [#allocation8], 4
      %s487 = int_to_ptr.vmem [resolvable:$true] %s486
      %489 = dma.vmem_to_hbm [thread:$0]  %s487, 128, %s5, [#allocation4]
    $region37: #{tpu_custom_call.1} parent=1 // pred_fallthru
      _
    // Predicated region
    $region38: #{tpu_custom_call.1} parent=1 // pred_check
      _
    $region39: #{tpu_custom_call.1} parent=1 // pred_check_branch
      %491 = sbr.rel (0) target = $region41
    $region40: #{tpu_custom_call.1} parent=1 // pred_region
      %s493 = ssub.s32 128, 128
      %494 = vsyncadd [#allocation10], %s493
      %s496 = sshll.u32 [#allocation9], 4
      %s497 = int_to_ptr.vmem [resolvable:$true] %s496
      %499 = dma.vmem_to_hbm [thread:$0]  %s497, 128, %s6, [#allocation10]
    $region41: #{tpu_custom_call.1} parent=1 // pred_fallthru
      _
    // Predicated region
    $region42: #{tpu_custom_call.1} parent=1 // pred_check
      _
    $region43: #{tpu_custom_call.1} parent=1 // pred_check_branch
      %501 = sbr.rel (0) target = $region45
    $region44: #{tpu_custom_call.1} parent=1 // pred_region
      %502 = dma.done [#allocation4], 128
    $region45: #{tpu_custom_call.1} parent=1 // pred_fallthru
      _
    // Predicated region
    $region46: #{tpu_custom_call.1} parent=1 // pred_check
      _
    $region47: #{tpu_custom_call.1} parent=1 // pred_check_branch
      %504 = sbr.rel (0) target = $region49
    $region48: #{tpu_custom_call.1} parent=1 // pred_region
      %505 = dma.done [#allocation10], 128
    $region49: #{tpu_custom_call.1} parent=1 // pred_fallthru
      _
    %506 = vsyncpa [#allocation3], 1
    %507 = vsyncpa [#allocation6], 1
    %508 = vsyncpa [#allocation4], 1
    %509 = vsyncpa [#allocation10], 1

</llo_original>
